<compile_context>
chip_gen: v7x
topology: tpu7x:2x2x1
jax: 0.10.0
libtpu: 0.0.40
codegen_flags: <defaults>
</compile_context>

<pallas_src>
import jax
import jax.numpy as jnp
from jax.experimental import pallas as pl
from jax.experimental.pallas import tpu as pltpu

_MIN_VMEM_LIMIT = 16 * 1024 * 1024
_FALLBACK_VMEM_CAP = 64 * 1024 * 1024   # assume the smallest gen (v7x) if the query fails
_LANE = 128                             # vreg / MXU lane width on all current gens


def _round_up(x, m):
    return (x + m - 1) // m * m


def _vmem_budget_bytes():
    """~80% of physical per-core VMEM: ~102 MiB on v5e/v6e, ~51 MiB on v7x."""
    try:
        cap = int(pltpu.get_tpu_info().vmem_capacity_bytes)
    except Exception:                   # no TPU context / older jax: be conservative
        cap = _FALLBACK_VMEM_CAP
    return int(cap * 0.80)


# ---------------------------------------------------------------------------
# Kernels
# ---------------------------------------------------------------------------
def _mlp_kernel(x_ref, w1_ref, b1_ref, w2_ref, b2_ref, o_ref):
    """Whole (padded) hidden dim resident in VMEM; one row tile per grid step."""
    # fc1 on the MXU with f32 accumulation; bias + ReLU epilogue in f32 (VPU).
    h = jnp.dot(x_ref[...], w1_ref[...], preferred_element_type=jnp.float32)
    h = jnp.maximum(h + b1_ref[...], 0.0)
    # fc2: W2/b2 are tiny and kept in f32, so h is never truncated.
    y = jnp.dot(h, w2_ref[...], preferred_element_type=jnp.float32) + b2_ref[...]
    o_ref[...] = y.astype(o_ref.dtype)


def _mlp_hidden_tiled_kernel(x_ref, w1_ref, b1_ref, w2_ref, b2_ref, o_ref, acc_ref):
    """Hidden axis partitioned across grid axis 1 (reduction, "arbitrary").

    ReLU(x @ W1[:, j] + b1[j]) depends only on hidden slice j, so the partial fc2
    products summed in the f32 accumulator equal the full output exactly.
    """
    j = pl.program_id(1)

    @pl.when(j == 0)
    def _():
        acc_ref[...] = jnp.zeros_like(acc_ref)

    h = jnp.dot(x_ref[...], w1_ref[...], preferred_element_type=jnp.float32)
    h = jnp.maximum(h + b1_ref[...], 0.0)
    acc_ref[...] += jnp.dot(h, w2_ref[...], preferred_element_type=jnp.float32)

    @pl.when(j == pl.num_programs(1) - 1)
    def _():
        o_ref[...] = (acc_ref[...] + b2_ref[...]).astype(o_ref.dtype)


# ---------------------------------------------------------------------------
# Tile selection
# ---------------------------------------------------------------------------
def _working_set_bytes(rt, ht, in_size, out_size, x_bytes, out_bytes):
    """VMEM working set: all BlockSpec tiles double-buffered + f32 intermediates."""
    weights = 2 * (in_size * ht * x_bytes          # W1 tile (compute dtype)
                   + ht * 4                        # b1 tile (f32)
                   + ht * out_size * 4             # W2 tile (f32)
                   + out_size * 4)                 # b2 (f32)
    streamed = 2 * rt * (in_size * x_bytes + out_size * out_bytes)   # x + out tiles
    interm = rt * (ht + out_size) * 4              # h + accumulator (f32)
    return weights + streamed + interm


def _pick_tiles(N, in_size, hidden_p, out_size, x_bytes, out_bytes, sub, budget):
    """Choose (row_tile, hidden_tile) inside the VMEM budget."""
    # Hidden tile: keep the whole (padded) hidden resident if its double-buffered W1
    # slab stays within ~half the budget; otherwise stream hidden in 128-col slabs so
    # the row tile still gets a useful share of VMEM.
    max_ht = (budget // 2) // max(2 * in_size * x_bytes, 1)
    ht = min(hidden_p, max(_LANE, (max_ht // _LANE) * _LANE))
    # TODO(synk): if even a 128-wide W1 slab overflows the budget (in_size > ~100K),
    # add an in_size (K-reduction) grid axis as well.

    if N <= sub:                        # tiny batch: single full-dim row block
        return N, ht

    def fits(rt):
        return _working_set_bytes(rt, ht, in_size, out_size,
                                  x_bytes, out_bytes) <= budget

    target = 2048 if x_bytes < 4 else 1024       # good mem-bound streaming tiles
    hi = min(target, _round_up(N, sub))
    if N >= 2 * sub:                    # >= 2 row blocks so both v7x TCs get work
        hi = min(hi, _round_up(pl.cdiv(N, 2), sub))
    rt = max(sub, (hi // sub) * sub)
    while rt > sub and not fits(rt):
        rt -= sub

    # Prefer an even number of row blocks (balanced across v7x's 2 TensorCores).
    nblk = pl.cdiv(N, rt)
    if nblk > 1 and nblk % 2 == 1:
        rt_even = max(sub, _round_up(pl.cdiv(N, nblk + 1), sub))
        if fits(rt_even):
            rt = rt_even
    return rt, ht


# ---------------------------------------------------------------------------
# Forward wrapper
# ---------------------------------------------------------------------------
def mlp_forward(feats, w1, b1, w2, b2, *, row_tile=None, hidden_tile=None,
                compute_dtype=jnp.bfloat16):
    """feats: [N, in_size] -> [N, out_size] = ReLU(feats @ W1 + b1) @ W2 + b2.

    compute_dtype: dtype feats/W1 are streamed in (default bf16). Both matmuls
    accumulate in f32 and W2/b2 always stay f32. Pass compute_dtype=None to
    stream feats/W1 in feats' own dtype (e.g. pure f32).
    """
    N, in_size = feats.shape
    hidden = w1.shape[1]
    out_size = w2.shape[1]
    out_dtype = feats.dtype

    cdt = jnp.dtype(feats.dtype) if compute_dtype is None else jnp.dtype(compute_dtype)
    x = feats.astype(cdt)
    x_bytes = cdt.itemsize
    out_bytes = jnp.dtype(out_dtype).itemsize
    sub = 16 if x_bytes < 4 else 8      # sublane packing multiple

    # Pad hidden to a lane multiple so fc1 uses full MXU columns (one-time pad of the
    # small resident weights; zero cols/rows are numerically exact).
    # TODO(synk): pad to 256 on v6e/v7x (2x256^2 MXU) when the extra pad is cheap.
    hidden_p = max(_round_up(hidden, _LANE), _LANE)

    budget = _vmem_budget_bytes()
    auto_rt, auto_ht = _pick_tiles(N, in_size, hidden_p, out_size,
                                   x_bytes, out_bytes, sub, budget)
    row_tile = auto_rt if row_tile is None else int(row_tile)
    hidden_tile = auto_ht if hidden_tile is None else int(hidden_tile)
    assert row_tile == N or row_tile % sub == 0, (
        f"row_tile={row_tile} must equal N or be a multiple of {sub} for {cdt}")
    assert hidden_tile % _LANE == 0, (
        f"hidden_tile={hidden_tile} must be a multiple of {_LANE}")
    hidden_p = _round_up(hidden_p, hidden_tile)   # hidden grid axis divides exactly

    # Resident weights in kernel layouts; W2/b2 stay f32 (tiny, avoids truncating h).
    w1c = w1.astype(cdt)
    b1f = jnp.asarray(b1, jnp.float32).reshape(1, hidden)
    w2f = jnp.asarray(w2, jnp.float32).reshape(hidden, out_size)
    b2f = jnp.asarray(b2, jnp.float32).reshape(1, out_size)
    if hidden_p != hidden:
        pad = hidden_p - hidden
        w1c = jnp.pad(w1c, ((0, 0), (0, pad)))
        b1f = jnp.pad(b1f, ((0, 0), (0, pad)))
        w2f = jnp.pad(w2f, ((0, pad), (0, 0)))

    n_row_blocks = pl.cdiv(N, row_tile)
    n_hid_blocks = hidden_p // hidden_tile

    ws = _working_set_bytes(row_tile, hidden_tile, in_size, out_size,
                            x_bytes, out_bytes)
    vmem_limit = int(min(max(int(ws * 1.25), _MIN_VMEM_LIMIT), budget))

    cost = pl.CostEstimate(
        flops=2 * N * hidden_p * (in_size + out_size),
        transcendentals=0,
        bytes_accessed=(N * in_size * x_bytes
                        + in_size * hidden_p * x_bytes
                        + hidden_p * (1 + out_size) * 4 + out_size * 4
                        + N * out_size * out_bytes))

    if n_hid_blocks == 1:
        # Resident-weight fast path: hidden fully in VMEM, grid over row tiles only.
        out = pl.pallas_call(
            _mlp_kernel,
            out_shape=jax.ShapeDtypeStruct((N, out_size), out_dtype),
            grid_spec=pltpu.PrefetchScalarGridSpec(
                num_scalar_prefetch=0,
                grid=(n_row_blocks,),
                in_specs=[
                    pl.BlockSpec((row_tile, in_size), lambda i: (i, 0)),   # streamed x
                    pl.BlockSpec((in_size, hidden_p), lambda i: (0, 0)),   # resident W1
                    pl.BlockSpec((1, hidden_p), lambda i: (0, 0)),         # resident b1
                    pl.BlockSpec((hidden_p, out_size), lambda i: (0, 0)),  # resident W2
                    pl.BlockSpec((1, out_size), lambda i: (0, 0)),         # resident b2
                ],
                out_specs=pl.BlockSpec((row_tile, out_size), lambda i: (i, 0)),
            ),
            compiler_params=pltpu.CompilerParams(
                dimension_semantics=("parallel",),
                vmem_limit_bytes=vmem_limit),
            cost_estimate=cost,
        )(x, w1c, b1f, w2f, b2f)
    else:
        # Hidden-tiled path: grid axis 1 is a reduction over hidden slabs ("arbitrary").
        out = pl.pallas_call(
            _mlp_hidden_tiled_kernel,
            out_shape=jax.ShapeDtypeStruct((N, out_size), out_dtype),
            grid_spec=pltpu.PrefetchScalarGridSpec(
                num_scalar_prefetch=0,
                grid=(n_row_blocks, n_hid_blocks),
                in_specs=[
                    pl.BlockSpec((row_tile, in_size), lambda i, j: (i, 0)),
                    pl.BlockSpec((in_size, hidden_tile), lambda i, j: (0, j)),
                    pl.BlockSpec((1, hidden_tile), lambda i, j: (0, j)),
                    pl.BlockSpec((hidden_tile, out_size), lambda i, j: (j, 0)),
                    pl.BlockSpec((1, out_size), lambda i, j: (0, 0)),
                ],
                out_specs=pl.BlockSpec((row_tile, out_size), lambda i, j: (i, 0)),
                scratch_shapes=[pltpu.VMEM((row_tile, out_size), jnp.float32)],
            ),
            compiler_params=pltpu.CompilerParams(
                dimension_semantics=("parallel", "arbitrary"),
                vmem_limit_bytes=vmem_limit),
            cost_estimate=cost,
        )(x, w1c, b1f, w2f, b2f)

    return out


def init_mlp_params(key, in_size, out_size=1, dtype=jnp.float32):
    """Deterministic synthetic init matching the PyTorch module's shapes."""
    hidden = int(in_size / 2 / 2)
    k1, k2, k3, k4 = jax.random.split(key, 4)
    # PyTorch nn.Linear default: U(-1/sqrt(fan_in), 1/sqrt(fan_in))
    bnd1 = 1.0 / (in_size ** 0.5)
    bnd2 = 1.0 / (hidden ** 0.5)
    w1 = jax.random.uniform(k1, (in_size, hidden), dtype, -bnd1, bnd1)
    b1 = jax.random.uniform(k2, (1, hidden), dtype, -bnd1, bnd1)
    w2 = jax.random.uniform(k3, (hidden, out_size), dtype, -bnd2, bnd2)
    b2 = jax.random.uniform(k4, (1, out_size), dtype, -bnd2, bnd2)
    return w1, b1, w2, b2


def _ref_mlp(feats, w1, b1, w2, b2):
    return jnp.maximum(feats @ w1 + b1, 0.0) @ w2 + b2


if __name__ == "__main__":
    key = jax.random.PRNGKey(0)
    k1, k2, k3, k4, k5, k6 = jax.random.split(key, 6)

    # --- Test 1: tiny batch, pure f32 streaming (single full-dim row block).
    N1, in1, out_size = 8, 32, 1                   # hidden = int(32/2/2) = 8
    feats1 = jax.random.normal(k1, (N1, in1), jnp.float32)
    p1 = init_mlp_params(k2, in1, out_size)
    o1 = jax.block_until_ready(mlp_forward(feats1, *p1, compute_dtype=None))
    r1 = _ref_mlp(feats1, *p1)
    assert o1.shape == (N1, out_size)
    assert jnp.allclose(o1, r1, atol=1e-5, rtol=1e-5)

    # --- Test 2: ragged N, multi-block pipelined grid, boundary block, f32.
    N2, in2 = 100, 64                              # hidden = 16 -> padded to 128
    feats2 = jax.random.normal(k3, (N2, in2), jnp.float32)
    p2 = init_mlp_params(k4, in2, out_size)
    r2 = _ref_mlp(feats2, *p2)
    o2 = jax.block_until_ready(
        mlp_forward(feats2, *p2, row_tile=32, compute_dtype=None))
    assert o2.shape == (N2, out_size)
    assert jnp.allclose(o2, r2, atol=1e-5, rtol=1e-5)

    # --- Test 3: default path (bf16 streaming, auto tiles) on the ragged batch.
    o3 = jax.block_until_ready(mlp_forward(feats2, *p2))
    assert o3.shape == (N2, out_size)
    assert jnp.allclose(o3, r2, atol=5e-2, rtol=5e-2)

    # --- Test 4: hidden-tiled reduction path (forced), f32 for exact comparison.
    N4, in4 = 64, 1024                             # hidden = 256, 2 hidden slabs of 128
    feats4 = jax.random.normal(k5, (N4, in4), jnp.float32)
    p4 = init_mlp_params(k6, in4, out_size)
    r4 = _ref_mlp(feats4, *p4)
    o4 = jax.block_until_ready(
        mlp_forward(feats4, *p4, hidden_tile=128, compute_dtype=None))
    assert o4.shape == (N4, out_size)
    assert jnp.allclose(o4, r4, atol=1e-4, rtol=1e-4)

    # --- Test 5: same data, default bf16 + auto tiles (resident fast path).
    o5 = jax.block_until_ready(mlp_forward(feats4, *p4))
    assert o5.shape == (N4, out_size)
    assert jnp.allclose(o5, r4, atol=5e-2, rtol=5e-2)

    print("KERNEL_OK")
</pallas_src>

<mosaic_0001>
module attributes {stable_mosaic.version = 11 : i64} {
  func.func @_mlp_kernel(%arg0: i32, %arg1: memref<8x32xf32, #tpu.memory_space<vmem>>, %arg2: memref<32x128xf32, #tpu.memory_space<vmem>>, %arg3: memref<1x128xf32, #tpu.memory_space<vmem>>, %arg4: memref<128x1xf32, #tpu.memory_space<vmem>>, %arg5: memref<1x1xf32, #tpu.memory_space<vmem>>, %arg6: memref<8x1xf32, #tpu.memory_space<vmem>>) attributes {dimension_semantics = [#tpu.dimension_semantics<parallel>], iteration_bounds = array<i64: 1>, scalar_prefetch = 0 : i64, scratch_operands = 0 : i64, tpu.core_type = #tpu.core_type<tc>, window_params = [{transform_indices = @transform_0, window_bounds = array<i64: 8, 32>}, {pipeline_mode = #tpu.pipeline_mode<synchronous>, transform_indices = @transform_1, window_bounds = array<i64: 32, 128>}, {pipeline_mode = #tpu.pipeline_mode<synchronous>, transform_indices = @transform_2, window_bounds = array<i64: 1, 128>}, {pipeline_mode = #tpu.pipeline_mode<synchronous>, transform_indices = @transform_3, window_bounds = array<i64: 128, 1>}, {pipeline_mode = #tpu.pipeline_mode<synchronous>, transform_indices = @transform_4, window_bounds = array<i64: 1, 1>}, {transform_indices = @transform_5, window_bounds = array<i64: 8, 1>}]} {
    %c0 = arith.constant 0 : index
    %c0_0 = arith.constant 0 : index
    %0 = vector.load %arg1[%c0, %c0_0] : memref<8x32xf32, #tpu.memory_space<vmem>>, vector<8x32xf32>
    %c0_1 = arith.constant 0 : index
    %c0_2 = arith.constant 0 : index
    %1 = vector.load %arg2[%c0_1, %c0_2] : memref<32x128xf32, #tpu.memory_space<vmem>>, vector<32x128xf32>
    %cst = arith.constant dense<0.000000e+00> : vector<8x128xf32>
    %2 = tpu.matmul %0, %1, %cst {dimension_numbers = #tpu.dot_dimension_numbers<[1], [0], [0], [1], [0, 0, 1, 1], [], []>} : vector<8x32xf32>, vector<32x128xf32>, vector<8x128xf32> -> vector<8x128xf32>
    %c0_3 = arith.constant 0 : index
    %c0_4 = arith.constant 0 : index
    %3 = vector.load %arg3[%c0_3, %c0_4] : memref<1x128xf32, #tpu.memory_space<vmem>>, vector<1x128xf32>
    %4 = vector.broadcast %3 : vector<1x128xf32> to vector<8x128xf32>
    %5 = arith.addf %2, %4 : vector<8x128xf32>
    %cst_5 = arith.constant 0.000000e+00 : f32
    %6 = vector.broadcast %cst_5 : f32 to vector<8x128xf32>
    %7 = arith.maximumf %5, %6 : vector<8x128xf32>
    %c0_6 = arith.constant 0 : index
    %c0_7 = arith.constant 0 : index
    %8 = vector.load %arg4[%c0_6, %c0_7] : memref<128x1xf32, #tpu.memory_space<vmem>>, vector<128x1xf32>
    %cst_8 = arith.constant dense<0.000000e+00> : vector<8x1xf32>
    %9 = tpu.matmul %7, %8, %cst_8 {dimension_numbers = #tpu.dot_dimension_numbers<[1], [0], [0], [1], [0, 0, 1, 1], [], []>} : vector<8x128xf32>, vector<128x1xf32>, vector<8x1xf32> -> vector<8x1xf32>
    %c0_9 = arith.constant 0 : index
    %c0_10 = arith.constant 0 : index
    %10 = vector.load %arg5[%c0_9, %c0_10] : memref<1x1xf32, #tpu.memory_space<vmem>>, vector<1x1xf32>
    %11 = vector.broadcast %10 : vector<1x1xf32> to vector<8x1xf32>
    %12 = arith.addf %9, %11 : vector<8x1xf32>
    %c0_11 = arith.constant 0 : index
    %c0_12 = arith.constant 0 : index
    %13 = vector.load %arg6[%c0_11, %c0_12] : memref<8x1xf32, #tpu.memory_space<vmem>>, vector<8x1xf32>
    tpu.vector_store %arg6[%c0_11, %c0_12], %12 {strides = array<i32>} : memref<8x1xf32, #tpu.memory_space<vmem>>, vector<8x1xf32>,
    return
  }
  func.func @transform_0(%arg0: i32) -> (i32, i32) {
    %c0_i32 = arith.constant 0 : i32
    %c0_i32_0 = arith.constant 0 : i32
    return %arg0, %c0_i32 : i32, i32
  }
  func.func @transform_1(%arg0: i32) -> (i32, i32) {
    %c0_i32 = arith.constant 0 : i32
    %c0_i32_0 = arith.constant 0 : i32
    %c0_i32_1 = arith.constant 0 : i32
    return %c0_i32, %c0_i32_0 : i32, i32
  }
  func.func @transform_2(%arg0: i32) -> (i32, i32) {
    %c0_i32 = arith.constant 0 : i32
    %c0_i32_0 = arith.constant 0 : i32
    %c0_i32_1 = arith.constant 0 : i32
    return %c0_i32, %c0_i32_0 : i32, i32
  }
  func.func @transform_3(%arg0: i32) -> (i32, i32) {
    %c0_i32 = arith.constant 0 : i32
    %c0_i32_0 = arith.constant 0 : i32
    %c0_i32_1 = arith.constant 0 : i32
    return %c0_i32, %c0_i32_0 : i32, i32
  }
  func.func @transform_4(%arg0: i32) -> (i32, i32) {
    %c0_i32 = arith.constant 0 : i32
    %c0_i32_0 = arith.constant 0 : i32
    %c0_i32_1 = arith.constant 0 : i32
    return %c0_i32, %c0_i32_0 : i32, i32
  }
  func.func @transform_5(%arg0: i32) -> (i32, i32) {
    %c0_i32 = arith.constant 0 : i32
    %c0_i32_0 = arith.constant 0 : i32
    return %arg0, %c0_i32 : i32, i32
  }
}

</mosaic_0001>

<llo_original>
// kernel: tpu_custom_call.1
$region0: #{tpu_custom_call.1}
  #allocation0 [shape = 'u32[]', space=smem, size = 0x4, offset = 0x4, fixed_abs, tag = 'smem constant byte address 0x4 - core index']
  #allocation1 [shape = 'u32[144,128]{1,0:T(1,128)}', space=vmem, size = 0x12000, scoped, tag = 'internal scratch']
  #allocation2 [shape = 'f32[1,1]{1,0:T(1,128)S(1)}', space=vmem, size = 0x200, scoped, tag = 'scoped memory for tpu_custom_call.1']
  %s0 = inlined_call_operand.vmem [shape: f32[8,32], index: 0, kind: input, shape index: {}]
  %s1 = inlined_call_operand.vmem [shape: f32[32,128], index: 1, kind: input, shape index: {}]
  %s2 = inlined_call_operand.vmem [shape: f32[1,128], index: 2, kind: input, shape index: {}]
  %s3 = inlined_call_operand.vmem [shape: f32[128,1], index: 3, kind: input, shape index: {}]
  %s4 = inlined_call_operand.<no memory space> [shape: f32[1,1], index: 4, kind: input, shape index: {}]
  %s5 = inlined_call_operand.vmem [shape: f32[8,1], index: 5, kind: output, shape index: {}]
  %s6 = sld [smem:[#allocation0]]
  $region30: #{tpu_custom_call.1} parent=0
    _
  %s8 = ssub.s32 1, %s6
  %s9 = scalar_select 0, %s8, %s6
  %v10 = vstv %s4
  %11 = vst [vmem:[#allocation2] sm:$0x1] %v10
  // Predicated region
  $region2: #{tpu_custom_call.1} parent=0 // pred_check
    _
  $region3: #{tpu_custom_call.1} parent=0 // pred_check_branch
    %13 = sbr.rel (0) target = $region5
  $region4: #{tpu_custom_call.1} parent=0 // pred_region
    _
  $region5: #{tpu_custom_call.1} parent=0 // pred_fallthru
    _
  // Predicated region
  $region6: #{tpu_custom_call.1} parent=0 // pred_check
    _
  $region7: #{tpu_custom_call.1} parent=0 // pred_check_branch
    %15 = sbr.rel (0) target = $region9
  $region8: #{tpu_custom_call.1} parent=0 // pred_region
    _
  $region9: #{tpu_custom_call.1} parent=0 // pred_fallthru
    _
  // Predicated region
  $region10: #{tpu_custom_call.1} parent=0 // pred_check
    _
  $region11: #{tpu_custom_call.1} parent=0 // pred_check_branch
    %17 = sbr.rel (0) target = $region13
  $region12: #{tpu_custom_call.1} parent=0 // pred_region
    _
  $region13: #{tpu_custom_call.1} parent=0 // pred_fallthru
    _
  // Predicated region
  $region14: #{tpu_custom_call.1} parent=0 // pred_check
    _
  $region15: #{tpu_custom_call.1} parent=0 // pred_check_branch
    %19 = sbr.rel (0) target = $region17
  $region16: #{tpu_custom_call.1} parent=0 // pred_region
    _
  $region17: #{tpu_custom_call.1} parent=0 // pred_fallthru
    _
  // Predicated region
  $region18: #{tpu_custom_call.1} parent=0 // pred_check
    _
  $region19: #{tpu_custom_call.1} parent=0 // pred_check_branch
    %21 = sbr.rel (0) target = $region21
  $region20: #{tpu_custom_call.1} parent=0 // pred_region
    _
  $region21: #{tpu_custom_call.1} parent=0 // pred_fallthru
    _
  %v22 = vld [vmem:[%s0] sm:$0xff]
  %v23 = vld [vmem:[%s1] sm:$0xff]
  %v24 = vld [vmem:[%s1 + $0x8] sm:$0xff]
  %v25 = vld [vmem:[%s1 + $0x10] sm:$0xff]
  %v26 = vld [vmem:[%s1 + $0x18] sm:$0xff]
  %v27 = vld [vmem:[%s2] sm:$0x1]
  %v29 = vlaneseq
  %v30 = vshrl.u32 %v29, 7
  %v31 = vsub.s32 0, %v30
  %v32 = vrot.slane %v27, %v31
  %vm34 = vcmask 261120
  %v36 = vsel %vm34, %v22, 0
  %38 = vmatprep.subr.mxu0 0.0
  %39 = vmatpush1.msra.mxu0 %v23
  %40 = vmatprep.subr.mxu0 0.0
  %41 = vmatpush1.msra.mxu0 %v24
  %42 = vmatprep.subr.mxu0 0.0
  %43 = vmatpush1.msra.mxu0 %v25
  %44 = vmatprep.subr.mxu0 0.0
  %45 = vmatpush1.msra.mxu0 %v26
  %46 = vmatprep.subr.mxu0 0.0
  %47 = vmatpush1.msra.mxu0 0.0
  %48 = vmatprep.subr.mxu0 0.0
  %49 = vmatpush1.msra.mxu0 0.0
  %50 = vmatprep.subr.mxu0 0.0
  %51 = vmatpush1.msra.mxu0 0.0
  %52 = vmatprep.subr.mxu0 0.0
  %53 = vmatpush1.msra.mxu0 0.0
  %54 = vmatprep.subr.mxu0 0.0
  %55 = vmatpush1.msra.mxu0 0.0
  %56 = vmatprep.subr.mxu0 0.0
  %57 = vmatpush1.msra.mxu0 0.0
  %58 = vmatprep.subr.mxu0 0.0
  %59 = vmatpush1.msra.mxu0 0.0
  %60 = vmatprep.subr.mxu0 0.0
  %61 = vmatpush1.msra.mxu0 0.0
  %62 = vmatprep.subr.mxu0 0.0
  %63 = vmatpush1.msra.mxu0 0.0
  %64 = vmatprep.subr.mxu0 0.0
  %65 = vmatpush1.msra.mxu0 0.0
  %66 = vmatprep.subr.mxu0 0.0
  %67 = vmatpush1.msra.mxu0 0.0
  %68 = vmatprep.subr.mxu0 0.0
  %69 = vmatpush1.msra.mxu0 0.0
  %70 = vmatprep.subr.mxu0 0.0
  %71 = vmatpush1.msra.mxu0 0.0
  %72 = vmatprep.subr.mxu0 0.0
  %73 = vmatpush1.msra.mxu0 0.0
  %74 = vmatprep.subr.mxu0 0.0
  %75 = vmatpush1.msra.mxu0 0.0
  %76 = vmatprep.subr.mxu0 0.0
  %77 = vmatpush1.msra.mxu0 0.0
  %78 = vmatprep.subr.mxu0 0.0
  %79 = vmatpush1.msra.mxu0 0.0
  %80 = vmatprep.subr.mxu0 0.0
  %81 = vmatpush1.msra.mxu0 0.0
  %82 = vmatprep.subr.mxu0 0.0
  %83 = vmatpush1.msra.mxu0 0.0
  %84 = vmatprep.subr.mxu0 0.0
  %85 = vmatpush1.msra.mxu0 0.0
  %86 = vmatprep.subr.mxu0 0.0
  %87 = vmatpush1.msra.mxu0 0.0
  %88 = vmatprep.subr.mxu0 0.0
  %89 = vmatpush1.msra.mxu0 0.0
  %90 = vmatprep.subr.mxu0 0.0
  %91 = vmatpush1.msra.mxu0 0.0
  %92 = vmatprep.subr.mxu0 0.0
  %93 = vmatpush1.msra.mxu0 0.0
  %94 = vmatprep.subr.mxu0 0.0
  %95 = vmatpush1.msra.mxu0 0.0
  %96 = vmatprep.subr.mxu0 0.0
  %97 = vmatpush1.msra.mxu0 0.0
  %98 = vmatprep.subr.mxu0 0.0
  %99 = vmatpush1.msra.mxu0 0.0
  %100 = vmatprep.subr.mxu0 0.0
  %101 = vmatpush1.msra.mxu0 0.0
  %102 = vmatprep.mubr.f32.mxu0 0.0
  %103 = vmatmul.mubr.f32.gmra.mrb[0].mxu0 %v36
  %v104 = vpop.f32.mrb[0].mxu0
  %v105 = vadd.f32 %v32, %v104
  %v106 = vpop.f32.mrb[0].mxu0
  %107 = vdwg.mxu0
  %v108 = vmax.f32 %v105, 0.0
  %v109 = vld [vmem:[%s3] sm:$0xff]
  %v110 = vld [vmem:[%s3 + $0x8] sm:$0xff]
  %v111 = vld [vmem:[%s3 + $0x10] sm:$0xff]
  %v112 = vld [vmem:[%s3 + $0x18] sm:$0xff]
  %v113 = vld [vmem:[%s3 + $0x20] sm:$0xff]
  %v114 = vld [vmem:[%s3 + $0x28] sm:$0xff]
  %v115 = vld [vmem:[%s3 + $0x30] sm:$0xff]
  %v116 = vld [vmem:[%s3 + $0x38] sm:$0xff]
  %v117 = vld [vmem:[%s3 + $0x40] sm:$0xff]
  %v118 = vld [vmem:[%s3 + $0x48] sm:$0xff]
  %v119 = vld [vmem:[%s3 + $0x50] sm:$0xff]
  %v120 = vld [vmem:[%s3 + $0x58] sm:$0xff]
  %v121 = vld [vmem:[%s3 + $0x60] sm:$0xff]
  %v122 = vld [vmem:[%s3 + $0x68] sm:$0xff]
  %v123 = vld [vmem:[%s3 + $0x70] sm:$0xff]
  %v124 = vld [vmem:[%s3 + $0x78] sm:$0xff]
  %v125 = vld [vmem:[#allocation2] sm:$0x1]
  %v127 = vlaneseq
  %v128 = vshrl.u32 %v127, 7
  %v129 = vsub.s32 0, %v128
  %v130 = vrot.slane %v125, %v129
  %132 = vmatprep.subr.mxu0 0.0
  %133 = vmatpush1.msra.mxu0 %v109
  %134 = vmatprep.subr.mxu0 0.0
  %135 = vmatpush1.msra.mxu0 %v110
  %136 = vmatprep.subr.mxu0 0.0
  %137 = vmatpush1.msra.mxu0 %v111
  %138 = vmatprep.subr.mxu0 0.0
  %139 = vmatpush1.msra.mxu0 %v112
  %140 = vmatprep.subr.mxu0 0.0
  %141 = vmatpush1.msra.mxu0 %v113
  %142 = vmatprep.subr.mxu0 0.0
  %143 = vmatpush1.msra.mxu0 %v114
  %144 = vmatprep.subr.mxu0 0.0
  %145 = vmatpush1.msra.mxu0 %v115
  %146 = vmatprep.subr.mxu0 0.0
  %147 = vmatpush1.msra.mxu0 %v116
  %148 = vmatprep.subr.mxu0 0.0
  %149 = vmatpush1.msra.mxu0 %v117
  %150 = vmatprep.subr.mxu0 0.0
  %151 = vmatpush1.msra.mxu0 %v118
  %152 = vmatprep.subr.mxu0 0.0
  %153 = vmatpush1.msra.mxu0 %v119
  %154 = vmatprep.subr.mxu0 0.0
  %155 = vmatpush1.msra.mxu0 %v120
  %156 = vmatprep.subr.mxu0 0.0
  %157 = vmatpush1.msra.mxu0 %v121
  %158 = vmatprep.subr.mxu0 0.0
  %159 = vmatpush1.msra.mxu0 %v122
  %160 = vmatprep.subr.mxu0 0.0
  %161 = vmatpush1.msra.mxu0 %v123
  %162 = vmatprep.subr.mxu0 0.0
  %163 = vmatpush1.msra.mxu0 %v124
  %164 = vmatprep.subr.mxu0 0.0
  %165 = vmatpush1.msra.mxu0 0.0
  %166 = vmatprep.subr.mxu0 0.0
  %167 = vmatpush1.msra.mxu0 0.0
  %168 = vmatprep.subr.mxu0 0.0
  %169 = vmatpush1.msra.mxu0 0.0
  %170 = vmatprep.subr.mxu0 0.0
  %171 = vmatpush1.msra.mxu0 0.0
  %172 = vmatprep.subr.mxu0 0.0
  %173 = vmatpush1.msra.mxu0 0.0
  %174 = vmatprep.subr.mxu0 0.0
  %175 = vmatpush1.msra.mxu0 0.0
  %176 = vmatprep.subr.mxu0 0.0
  %177 = vmatpush1.msra.mxu0 0.0
  %178 = vmatprep.subr.mxu0 0.0
  %179 = vmatpush1.msra.mxu0 0.0
  %180 = vmatprep.subr.mxu0 0.0
  %181 = vmatpush1.msra.mxu0 0.0
  %182 = vmatprep.subr.mxu0 0.0
  %183 = vmatpush1.msra.mxu0 0.0
  %184 = vmatprep.subr.mxu0 0.0
  %185 = vmatpush1.msra.mxu0 0.0
  %186 = vmatprep.subr.mxu0 0.0
  %187 = vmatpush1.msra.mxu0 0.0
  %188 = vmatprep.subr.mxu0 0.0
  %189 = vmatpush1.msra.mxu0 0.0
  %190 = vmatprep.subr.mxu0 0.0
  %191 = vmatpush1.msra.mxu0 0.0
  %192 = vmatprep.subr.mxu0 0.0
  %193 = vmatpush1.msra.mxu0 0.0
  %194 = vmatprep.subr.mxu0 0.0
  %195 = vmatpush1.msra.mxu0 0.0
  %196 = vmatprep.mubr.f32.mxu0 0.0
  %197 = vmatmul.mubr.f32.gmra.mrb[0].mxu0 %v108
  %v198 = vpop.f32.mrb[0].mxu0
  %v199 = vadd.f32 %v130, %v198
  %v200 = vpop.f32.mrb[0].mxu0
  %201 = vdwg.mxu0
  %vm202 = vcmask 7168
  %203 = vst.msk [vmem:[%s5] sm:$0xff] %vm202, %v199
  // Predicated region
  $region22: #{tpu_custom_call.1} parent=0 // pred_check
    _
  $region23: #{tpu_custom_call.1} parent=0 // pred_check_branch
    %205 = sbr.rel (0) target = $region25
  $region24: #{tpu_custom_call.1} parent=0 // pred_region
    _
  $region25: #{tpu_custom_call.1} parent=0 // pred_fallthru
    _
  // Predicated region
  $region26: #{tpu_custom_call.1} parent=0 // pred_check
    _
  $region27: #{tpu_custom_call.1} parent=0 // pred_check_branch
    %207 = sbr.rel (0) target = $region29
  $region28: #{tpu_custom_call.1} parent=0 // pred_region
    _
  $region29: #{tpu_custom_call.1} parent=0 // pred_fallthru
    _

</llo_original>
